<compile_context>
chip_gen: v5e
topology: v5e:2x2
jax: 0.10.0
libtpu: 0.0.40
codegen_flags: <defaults>
</compile_context>

<pallas_src>
import jax
import jax.numpy as jnp
from jax.experimental import pallas as pl
from jax.experimental.pallas import tpu as pltpu

BETA = 1.0
THRESHOLD = 1.0
NUM_STEPS = 5
NUM_INPUT = 2
NUM_HIDDEN = 2
NUM_OUTPUT = 2

LANE = 128            # batch lanes per vreg row
SUB_TILE = 8          # sublane rows of batch per grid step -> batch tile of 1024

# Output row layout (first axis of the kernel output block), grouped by tensor:
ROW_SPK1 = 0
ROW_MEM1 = NUM_STEPS * NUM_HIDDEN          # 10
ROW_SPK2 = 2 * NUM_STEPS * NUM_HIDDEN      # 20
ROW_MEM2 = 3 * NUM_STEPS * NUM_HIDDEN      # 30
OUT_ROWS = 4 * NUM_STEPS * NUM_HIDDEN      # 40

assert BETA == 1.0 and THRESHOLD == 1.0, "kernel exploits beta==1, threshold==1"
assert NUM_INPUT == 2 and NUM_HIDDEN == 2 and NUM_OUTPUT == 2, "FMAs unrolled for 2 features"


def snn_kernel(x_ref, w1_ref, w2_ref, out_ref):
    """Whole recurrent forward for one batch tile (batch on lanes).

    x_ref:   [NUM_STEPS*NUM_INPUT, sub, 128]  (VMEM) row r = t*NUM_INPUT + feature
    w1_ref:  [NUM_HIDDEN*NUM_INPUT]           (SMEM, PyTorch row-major [out, in])
    w2_ref:  [NUM_OUTPUT*NUM_HIDDEN]          (SMEM)
    out_ref: [OUT_ROWS, sub, 128]  rows 0-9 spk1, 10-19 mem1, 20-29 spk2, 30-39 mem2
             (within a group: row = t*2 + feature)
    """
    x_all = x_ref[...]                       # [10, sub, 128] -- one lane-dense load
    bshape = x_all.shape[1:]                 # (sub, 128): full-vreg state tile

    # Broadcast the 8 SMEM scalar weights to state-tile shape ONCE (hoisted out
    # of the unrolled time loop; JAX does not CSE broadcast_in_dim).
    w1_00 = jnp.full(bshape, w1_ref[0], jnp.float32)
    w1_01 = jnp.full(bshape, w1_ref[1], jnp.float32)
    w1_10 = jnp.full(bshape, w1_ref[2], jnp.float32)
    w1_11 = jnp.full(bshape, w1_ref[3], jnp.float32)
    w2_00 = jnp.full(bshape, w2_ref[0], jnp.float32)
    w2_01 = jnp.full(bshape, w2_ref[1], jnp.float32)
    w2_10 = jnp.full(bshape, w2_ref[2], jnp.float32)
    w2_11 = jnp.full(bshape, w2_ref[3], jnp.float32)

    zeros = jnp.zeros(bshape, jnp.float32)
    mem1_0 = zeros; mem1_1 = zeros
    mem2_0 = zeros; mem2_1 = zeros
    # reset_t == spk_{t-1} for beta=1 / threshold=1 / subtract-reset (spk_{-1}=0).
    spk1_0 = zeros; spk1_1 = zeros
    spk2_0 = zeros; spk2_1 = zeros

    # NUM_STEPS is tiny & static -> fully unrolled; recurrence stays in vregs.
    for t in range(NUM_STEPS):
        x0 = x_all[NUM_INPUT * t]            # [sub, 128] full-vreg tiles
        x1 = x_all[NUM_INPUT * t + 1]

        # fc1 (no bias) as VPU FMAs + Leaky LIF #1
        cur1_0 = x0 * w1_00 + x1 * w1_01
        cur1_1 = x0 * w1_10 + x1 * w1_11
        mem1_0 = mem1_0 + cur1_0 - spk1_0    # reset = previous spike
        mem1_1 = mem1_1 + cur1_1 - spk1_1
        spk1_0 = (mem1_0 > THRESHOLD).astype(jnp.float32)
        spk1_1 = (mem1_1 > THRESHOLD).astype(jnp.float32)

        # fc2 (no bias) as VPU FMAs + Leaky LIF #2
        cur2_0 = spk1_0 * w2_00 + spk1_1 * w2_01
        cur2_1 = spk1_0 * w2_10 + spk1_1 * w2_11
        mem2_0 = mem2_0 + cur2_0 - spk2_0
        mem2_1 = mem2_1 + cur2_1 - spk2_1
        spk2_0 = (mem2_0 > THRESHOLD).astype(jnp.float32)
        spk2_1 = (mem2_1 > THRESHOLD).astype(jnp.float32)

        # Lane-dense, full-vreg static sublane-row stores (no masked stores,
        # no lane-assembly selects).
        r = NUM_HIDDEN * t
        out_ref[ROW_SPK1 + r] = spk1_0
        out_ref[ROW_SPK1 + r + 1] = spk1_1
        out_ref[ROW_MEM1 + r] = mem1_0
        out_ref[ROW_MEM1 + r + 1] = mem1_1
        out_ref[ROW_SPK2 + r] = spk2_0
        out_ref[ROW_SPK2 + r + 1] = spk2_1
        out_ref[ROW_MEM2 + r] = mem2_0
        out_ref[ROW_MEM2 + r + 1] = mem2_1


def net_forward(x, w1, w2):
    """x: [T, B, NUM_INPUT]; w1: [NUM_HIDDEN, NUM_INPUT]; w2: [NUM_OUTPUT, NUM_HIDDEN]
    (PyTorch nn.Linear weight layout). Returns (spk1_rec, mem1_rec, spk2_rec, mem2_rec),
    each [T, B, 2]."""
    T, B, NI = x.shape
    assert T == NUM_STEPS and NI == NUM_INPUT

    # Batch on lanes: pad B up to the tile size and view it as (rows, 128 lanes).
    Rb = pl.cdiv(B, LANE)                    # 128-lane batch rows needed
    if Rb <= SUB_TILE:
        sub = Rb                             # single tile: any size (== full dim) is legal
        Rp = Rb
    else:
        sub = SUB_TILE                       # tiled: sublane dim must be a multiple of 8
        Rp = pl.cdiv(Rb, sub) * sub
    Bp = Rp * LANE

    xp = jnp.pad(x.astype(jnp.float32), ((0, 0), (0, Bp - B), (0, 0)))
    # [T*NI, Rp, 128]: feature/time on the leading (sublane-row) axis, batch on lanes.
    x3d = jnp.transpose(xp, (0, 2, 1)).reshape(T * NI, Rp, LANE)

    w1f = w1.astype(jnp.float32).reshape(-1)   # [4] scalars for SMEM
    w2f = w2.astype(jnp.float32).reshape(-1)   # [4] scalars for SMEM

    fused = pl.pallas_call(
        snn_kernel,
        out_shape=jax.ShapeDtypeStruct((OUT_ROWS, Rp, LANE), jnp.float32),
        grid=(Rp // sub,),
        in_specs=[
            pl.BlockSpec((T * NI, sub, LANE), lambda b: (0, b, 0)),     # x tile (VMEM)
            pl.BlockSpec(memory_space=pltpu.MemorySpace.SMEM),          # w1 scalars
            pl.BlockSpec(memory_space=pltpu.MemorySpace.SMEM),          # w2 scalars
        ],
        out_specs=pl.BlockSpec((OUT_ROWS, sub, LANE), lambda b: (0, b, 0)),
        compiler_params=pltpu.CompilerParams(
            dimension_semantics=("parallel",)),                         # megacore on v7x
    )(x3d, w1f, w2f)

    # Unfuse: rows are [tensor(4), t(T), feature(2)] with batch flat on the last axis.
    r = fused.reshape(4, NUM_STEPS, NUM_HIDDEN, Bp)[..., :B]   # [4, T, 2, B]
    r = jnp.transpose(r, (0, 1, 3, 2))                         # [4, T, B, 2] (size-2 axis only)
    return r[0], r[1], r[2], r[3]


def net_forward_ref(x, w1, w2):
    """Pure-JAX reference of the PyTorch forward, for correctness check."""
    T, B, _ = x.shape
    mem1 = jnp.zeros((B, NUM_HIDDEN), jnp.float32)
    mem2 = jnp.zeros((B, NUM_OUTPUT), jnp.float32)
    s1, m1, s2, m2 = [], [], [], []
    for t in range(T):
        cur1 = x[t] @ w1.T
        reset1 = (mem1 > THRESHOLD).astype(jnp.float32)
        mem1 = BETA * mem1 + cur1 - reset1 * THRESHOLD
        spk1 = (mem1 > THRESHOLD).astype(jnp.float32)
        cur2 = spk1 @ w2.T
        reset2 = (mem2 > THRESHOLD).astype(jnp.float32)
        mem2 = BETA * mem2 + cur2 - reset2 * THRESHOLD
        spk2 = (mem2 > THRESHOLD).astype(jnp.float32)
        s1.append(spk1); m1.append(mem1); s2.append(spk2); m2.append(mem2)
    return (jnp.stack(s1), jnp.stack(m1), jnp.stack(s2), jnp.stack(m2))


if __name__ == "__main__":
    key = jax.random.PRNGKey(0)
    kx, k1, k2 = jax.random.split(key, 3)

    # Deterministic init mimicking nn.Linear default: U(-1/sqrt(fan_in), 1/sqrt(fan_in)).
    b1 = 1.0 / (NUM_INPUT ** 0.5)
    b2 = 1.0 / (NUM_HIDDEN ** 0.5)
    w1 = jax.random.uniform(k1, (NUM_HIDDEN, NUM_INPUT), jnp.float32, -b1, b1)
    w2 = jax.random.uniform(k2, (NUM_OUTPUT, NUM_HIDDEN), jnp.float32, -b2, b2)

    names = ("spk1_rec", "mem1_rec", "spk2_rec", "mem2_rec")
    # batch=8: tiny single-tile path; batch=2000: ragged padding + 2 parallel grid steps.
    for batch in (8, 2000):
        kx, ksub = jax.random.split(kx)
        # Inputs scaled up a bit so the membranes actually cross threshold.
        x = 3.0 * jax.random.normal(ksub, (NUM_STEPS, batch, NUM_INPUT), dtype=jnp.float32)

        outs = jax.block_until_ready(net_forward(x, w1, w2))
        refs = net_forward_ref(x, w1, w2)
        for name, got, ref in zip(names, outs, refs):
            assert got.shape == ref.shape, (name, got.shape, ref.shape)
            assert jnp.allclose(got, ref, atol=1e-5, rtol=1e-5), name

    print("KERNEL_OK")
</pallas_src>

<mosaic_0001>
module attributes {stable_mosaic.version = 11 : i64} {
  func.func @snn_kernel(%arg0: i32, %arg1: memref<10x1x128xf32, #tpu.memory_space<vmem>>, %arg2: memref<4xf32, #tpu.memory_space<smem>>, %arg3: memref<4xf32, #tpu.memory_space<smem>>, %arg4: memref<40x1x128xf32, #tpu.memory_space<vmem>>) attributes {dimension_semantics = [#tpu.dimension_semantics<parallel>], iteration_bounds = array<i64: 1>, scalar_prefetch = 0 : i64, scratch_operands = 0 : i64, tpu.core_type = #tpu.core_type<tc>, window_params = [{transform_indices = @transform_0, window_bounds = array<i64: 10, 1, 128>}, {transform_indices = @transform_1, window_bounds = array<i64: 4>}, {transform_indices = @transform_2, window_bounds = array<i64: 4>}, {transform_indices = @transform_3, window_bounds = array<i64: 40, 1, 128>}]} {
    %c0 = arith.constant 0 : index
    %c0_0 = arith.constant 0 : index
    %c0_1 = arith.constant 0 : index
    %0 = vector.load %arg1[%c0, %c0_0, %c0_1] : memref<10x1x128xf32, #tpu.memory_space<vmem>>, vector<10x1x128xf32>
    %c0_2 = arith.constant 0 : index
    %1 = memref.load %arg2[%c0_2] : memref<4xf32, #tpu.memory_space<smem>>
    %2 = vector.broadcast %1 : f32 to vector<1x128xf32>
    %c1 = arith.constant 1 : index
    %3 = memref.load %arg2[%c1] : memref<4xf32, #tpu.memory_space<smem>>
    %4 = vector.broadcast %3 : f32 to vector<1x128xf32>
    %c2 = arith.constant 2 : index
    %5 = memref.load %arg2[%c2] : memref<4xf32, #tpu.memory_space<smem>>
    %6 = vector.broadcast %5 : f32 to vector<1x128xf32>
    %c3 = arith.constant 3 : index
    %7 = memref.load %arg2[%c3] : memref<4xf32, #tpu.memory_space<smem>>
    %8 = vector.broadcast %7 : f32 to vector<1x128xf32>
    %c0_3 = arith.constant 0 : index
    %9 = memref.load %arg3[%c0_3] : memref<4xf32, #tpu.memory_space<smem>>
    %10 = vector.broadcast %9 : f32 to vector<1x128xf32>
    %c1_4 = arith.constant 1 : index
    %11 = memref.load %arg3[%c1_4] : memref<4xf32, #tpu.memory_space<smem>>
    %12 = vector.broadcast %11 : f32 to vector<1x128xf32>
    %c2_5 = arith.constant 2 : index
    %13 = memref.load %arg3[%c2_5] : memref<4xf32, #tpu.memory_space<smem>>
    %14 = vector.broadcast %13 : f32 to vector<1x128xf32>
    %c3_6 = arith.constant 3 : index
    %15 = memref.load %arg3[%c3_6] : memref<4xf32, #tpu.memory_space<smem>>
    %16 = vector.broadcast %15 : f32 to vector<1x128xf32>
    %cst = arith.constant 0.000000e+00 : f32
    %17 = vector.broadcast %cst : f32 to vector<1x128xf32>
    %18 = vector.extract_strided_slice %0 {offsets = [0, 0, 0], sizes = [1, 1, 128], strides = [1, 1, 1]} : vector<10x1x128xf32> to vector<1x1x128xf32>
    %19 = vector.shape_cast %18 : vector<1x1x128xf32> to vector<1x128xf32>
    %20 = vector.extract_strided_slice %0 {offsets = [1, 0, 0], sizes = [1, 1, 128], strides = [1, 1, 1]} : vector<10x1x128xf32> to vector<1x1x128xf32>
    %21 = vector.shape_cast %20 : vector<1x1x128xf32> to vector<1x128xf32>
    %22 = arith.mulf %19, %2 : vector<1x128xf32>
    %23 = arith.mulf %21, %4 : vector<1x128xf32>
    %24 = arith.addf %22, %23 : vector<1x128xf32>
    %25 = arith.mulf %19, %6 : vector<1x128xf32>
    %26 = arith.mulf %21, %8 : vector<1x128xf32>
    %27 = arith.addf %25, %26 : vector<1x128xf32>
    %28 = arith.addf %17, %24 : vector<1x128xf32>
    %29 = arith.subf %28, %17 : vector<1x128xf32>
    %30 = arith.addf %17, %27 : vector<1x128xf32>
    %31 = arith.subf %30, %17 : vector<1x128xf32>
    %cst_7 = arith.constant 1.000000e+00 : f32
    %32 = vector.broadcast %cst_7 : f32 to vector<1x128xf32>
    %33 = arith.cmpf ogt, %29, %32 : vector<1x128xf32>
    %34 = arith.extui %33 : vector<1x128xi1> to vector<1x128xi32>
    %35 = arith.sitofp %34 : vector<1x128xi32> to vector<1x128xf32>
    %cst_8 = arith.constant 1.000000e+00 : f32
    %36 = vector.broadcast %cst_8 : f32 to vector<1x128xf32>
    %37 = arith.cmpf ogt, %31, %36 : vector<1x128xf32>
    %38 = arith.extui %37 : vector<1x128xi1> to vector<1x128xi32>
    %39 = arith.sitofp %38 : vector<1x128xi32> to vector<1x128xf32>
    %40 = arith.mulf %35, %10 : vector<1x128xf32>
    %41 = arith.mulf %39, %12 : vector<1x128xf32>
    %42 = arith.addf %40, %41 : vector<1x128xf32>
    %43 = arith.mulf %35, %14 : vector<1x128xf32>
    %44 = arith.mulf %39, %16 : vector<1x128xf32>
    %45 = arith.addf %43, %44 : vector<1x128xf32>
    %46 = arith.addf %17, %42 : vector<1x128xf32>
    %47 = arith.subf %46, %17 : vector<1x128xf32>
    %48 = arith.addf %17, %45 : vector<1x128xf32>
    %49 = arith.subf %48, %17 : vector<1x128xf32>
    %cst_9 = arith.constant 1.000000e+00 : f32
    %50 = vector.broadcast %cst_9 : f32 to vector<1x128xf32>
    %51 = arith.cmpf ogt, %47, %50 : vector<1x128xf32>
    %52 = arith.extui %51 : vector<1x128xi1> to vector<1x128xi32>
    %53 = arith.sitofp %52 : vector<1x128xi32> to vector<1x128xf32>
    %cst_10 = arith.constant 1.000000e+00 : f32
    %54 = vector.broadcast %cst_10 : f32 to vector<1x128xf32>
    %55 = arith.cmpf ogt, %49, %54 : vector<1x128xf32>
    %56 = arith.extui %55 : vector<1x128xi1> to vector<1x128xi32>
    %57 = arith.sitofp %56 : vector<1x128xi32> to vector<1x128xf32>
    %c0_11 = arith.constant 0 : index
    %c0_12 = arith.constant 0 : index
    %c0_13 = arith.constant 0 : index
    %58 = vector.load %arg4[%c0_11, %c0_12, %c0_13] : memref<40x1x128xf32, #tpu.memory_space<vmem>>, vector<1x1x128xf32>
    %59 = vector.shape_cast %58 : vector<1x1x128xf32> to vector<1x128xf32>
    %60 = vector.shape_cast %35 : vector<1x128xf32> to vector<1x1x128xf32>
    tpu.vector_store %arg4[%c0_11, %c0_12, %c0_13], %60 {strides = array<i32>} : memref<40x1x128xf32, #tpu.memory_space<vmem>>, vector<1x1x128xf32>,
    %c1_14 = arith.constant 1 : index
    %c0_15 = arith.constant 0 : index
    %c0_16 = arith.constant 0 : index
    %61 = vector.load %arg4[%c1_14, %c0_15, %c0_16] : memref<40x1x128xf32, #tpu.memory_space<vmem>>, vector<1x1x128xf32>
    %62 = vector.shape_cast %61 : vector<1x1x128xf32> to vector<1x128xf32>
    %63 = vector.shape_cast %39 : vector<1x128xf32> to vector<1x1x128xf32>
    tpu.vector_store %arg4[%c1_14, %c0_15, %c0_16], %63 {strides = array<i32>} : memref<40x1x128xf32, #tpu.memory_space<vmem>>, vector<1x1x128xf32>,
    %c10 = arith.constant 10 : index
    %c0_17 = arith.constant 0 : index
    %c0_18 = arith.constant 0 : index
    %64 = vector.load %arg4[%c10, %c0_17, %c0_18] : memref<40x1x128xf32, #tpu.memory_space<vmem>>, vector<1x1x128xf32>
    %65 = vector.shape_cast %64 : vector<1x1x128xf32> to vector<1x128xf32>
    %66 = vector.shape_cast %29 : vector<1x128xf32> to vector<1x1x128xf32>
    tpu.vector_store %arg4[%c10, %c0_17, %c0_18], %66 {strides = array<i32>} : memref<40x1x128xf32, #tpu.memory_space<vmem>>, vector<1x1x128xf32>,
    %c11 = arith.constant 11 : index
    %c0_19 = arith.constant 0 : index
    %c0_20 = arith.constant 0 : index
    %67 = vector.load %arg4[%c11, %c0_19, %c0_20] : memref<40x1x128xf32, #tpu.memory_space<vmem>>, vector<1x1x128xf32>
    %68 = vector.shape_cast %67 : vector<1x1x128xf32> to vector<1x128xf32>
    %69 = vector.shape_cast %31 : vector<1x128xf32> to vector<1x1x128xf32>
    tpu.vector_store %arg4[%c11, %c0_19, %c0_20], %69 {strides = array<i32>} : memref<40x1x128xf32, #tpu.memory_space<vmem>>, vector<1x1x128xf32>,
    %c20 = arith.constant 20 : index
    %c0_21 = arith.constant 0 : index
    %c0_22 = arith.constant 0 : index
    %70 = vector.load %arg4[%c20, %c0_21, %c0_22] : memref<40x1x128xf32, #tpu.memory_space<vmem>>, vector<1x1x128xf32>
    %71 = vector.shape_cast %70 : vector<1x1x128xf32> to vector<1x128xf32>
    %72 = vector.shape_cast %53 : vector<1x128xf32> to vector<1x1x128xf32>
    tpu.vector_store %arg4[%c20, %c0_21, %c0_22], %72 {strides = array<i32>} : memref<40x1x128xf32, #tpu.memory_space<vmem>>, vector<1x1x128xf32>,
    %c21 = arith.constant 21 : index
    %c0_23 = arith.constant 0 : index
    %c0_24 = arith.constant 0 : index
    %73 = vector.load %arg4[%c21, %c0_23, %c0_24] : memref<40x1x128xf32, #tpu.memory_space<vmem>>, vector<1x1x128xf32>
    %74 = vector.shape_cast %73 : vector<1x1x128xf32> to vector<1x128xf32>
    %75 = vector.shape_cast %57 : vector<1x128xf32> to vector<1x1x128xf32>
    tpu.vector_store %arg4[%c21, %c0_23, %c0_24], %75 {strides = array<i32>} : memref<40x1x128xf32, #tpu.memory_space<vmem>>, vector<1x1x128xf32>,
    %c30 = arith.constant 30 : index
    %c0_25 = arith.constant 0 : index
    %c0_26 = arith.constant 0 : index
    %76 = vector.load %arg4[%c30, %c0_25, %c0_26] : memref<40x1x128xf32, #tpu.memory_space<vmem>>, vector<1x1x128xf32>
    %77 = vector.shape_cast %76 : vector<1x1x128xf32> to vector<1x128xf32>
    %78 = vector.shape_cast %47 : vector<1x128xf32> to vector<1x1x128xf32>
    tpu.vector_store %arg4[%c30, %c0_25, %c0_26], %78 {strides = array<i32>} : memref<40x1x128xf32, #tpu.memory_space<vmem>>, vector<1x1x128xf32>,
    %c31 = arith.constant 31 : index
    %c0_27 = arith.constant 0 : index
    %c0_28 = arith.constant 0 : index
    %79 = vector.load %arg4[%c31, %c0_27, %c0_28] : memref<40x1x128xf32, #tpu.memory_space<vmem>>, vector<1x1x128xf32>
    %80 = vector.shape_cast %79 : vector<1x1x128xf32> to vector<1x128xf32>
    %81 = vector.shape_cast %49 : vector<1x128xf32> to vector<1x1x128xf32>
    tpu.vector_store %arg4[%c31, %c0_27, %c0_28], %81 {strides = array<i32>} : memref<40x1x128xf32, #tpu.memory_space<vmem>>, vector<1x1x128xf32>,
    %82 = vector.extract_strided_slice %0 {offsets = [2, 0, 0], sizes = [1, 1, 128], strides = [1, 1, 1]} : vector<10x1x128xf32> to vector<1x1x128xf32>
    %83 = vector.shape_cast %82 : vector<1x1x128xf32> to vector<1x128xf32>
    %84 = vector.extract_strided_slice %0 {offsets = [3, 0, 0], sizes = [1, 1, 128], strides = [1, 1, 1]} : vector<10x1x128xf32> to vector<1x1x128xf32>
    %85 = vector.shape_cast %84 : vector<1x1x128xf32> to vector<1x128xf32>
    %86 = arith.mulf %83, %2 : vector<1x128xf32>
    %87 = arith.mulf %85, %4 : vector<1x128xf32>
    %88 = arith.addf %86, %87 : vector<1x128xf32>
    %89 = arith.mulf %83, %6 : vector<1x128xf32>
    %90 = arith.mulf %85, %8 : vector<1x128xf32>
    %91 = arith.addf %89, %90 : vector<1x128xf32>
    %92 = arith.addf %29, %88 : vector<1x128xf32>
    %93 = arith.subf %92, %35 : vector<1x128xf32>
    %94 = arith.addf %31, %91 : vector<1x128xf32>
    %95 = arith.subf %94, %39 : vector<1x128xf32>
    %cst_29 = arith.constant 1.000000e+00 : f32
    %96 = vector.broadcast %cst_29 : f32 to vector<1x128xf32>
    %97 = arith.cmpf ogt, %93, %96 : vector<1x128xf32>
    %98 = arith.extui %97 : vector<1x128xi1> to vector<1x128xi32>
    %99 = arith.sitofp %98 : vector<1x128xi32> to vector<1x128xf32>
    %cst_30 = arith.constant 1.000000e+00 : f32
    %100 = vector.broadcast %cst_30 : f32 to vector<1x128xf32>
    %101 = arith.cmpf ogt, %95, %100 : vector<1x128xf32>
    %102 = arith.extui %101 : vector<1x128xi1> to vector<1x128xi32>
    %103 = arith.sitofp %102 : vector<1x128xi32> to vector<1x128xf32>
    %104 = arith.mulf %99, %10 : vector<1x128xf32>
    %105 = arith.mulf %103, %12 : vector<1x128xf32>
    %106 = arith.addf %104, %105 : vector<1x128xf32>
    %107 = arith.mulf %99, %14 : vector<1x128xf32>
    %108 = arith.mulf %103, %16 : vector<1x128xf32>
    %109 = arith.addf %107, %108 : vector<1x128xf32>
    %110 = arith.addf %47, %106 : vector<1x128xf32>
    %111 = arith.subf %110, %53 : vector<1x128xf32>
    %112 = arith.addf %49, %109 : vector<1x128xf32>
    %113 = arith.subf %112, %57 : vector<1x128xf32>
    %cst_31 = arith.constant 1.000000e+00 : f32
    %114 = vector.broadcast %cst_31 : f32 to vector<1x128xf32>
    %115 = arith.cmpf ogt, %111, %114 : vector<1x128xf32>
    %116 = arith.extui %115 : vector<1x128xi1> to vector<1x128xi32>
    %117 = arith.sitofp %116 : vector<1x128xi32> to vector<1x128xf32>
    %cst_32 = arith.constant 1.000000e+00 : f32
    %118 = vector.broadcast %cst_32 : f32 to vector<1x128xf32>
    %119 = arith.cmpf ogt, %113, %118 : vector<1x128xf32>
    %120 = arith.extui %119 : vector<1x128xi1> to vector<1x128xi32>
    %121 = arith.sitofp %120 : vector<1x128xi32> to vector<1x128xf32>
    %c2_33 = arith.constant 2 : index
    %c0_34 = arith.constant 0 : index
    %c0_35 = arith.constant 0 : index
    %122 = vector.load %arg4[%c2_33, %c0_34, %c0_35] : memref<40x1x128xf32, #tpu.memory_space<vmem>>, vector<1x1x128xf32>
    %123 = vector.shape_cast %122 : vector<1x1x128xf32> to vector<1x128xf32>
    %124 = vector.shape_cast %99 : vector<1x128xf32> to vector<1x1x128xf32>
    tpu.vector_store %arg4[%c2_33, %c0_34, %c0_35], %124 {strides = array<i32>} : memref<40x1x128xf32, #tpu.memory_space<vmem>>, vector<1x1x128xf32>,
    %c3_36 = arith.constant 3 : index
    %c0_37 = arith.constant 0 : index
    %c0_38 = arith.constant 0 : index
    %125 = vector.load %arg4[%c3_36, %c0_37, %c0_38] : memref<40x1x128xf32, #tpu.memory_space<vmem>>, vector<1x1x128xf32>
    %126 = vector.shape_cast %125 : vector<1x1x128xf32> to vector<1x128xf32>
    %127 = vector.shape_cast %103 : vector<1x128xf32> to vector<1x1x128xf32>
    tpu.vector_store %arg4[%c3_36, %c0_37, %c0_38], %127 {strides = array<i32>} : memref<40x1x128xf32, #tpu.memory_space<vmem>>, vector<1x1x128xf32>,
    %c12 = arith.constant 12 : index
    %c0_39 = arith.constant 0 : index
    %c0_40 = arith.constant 0 : index
    %128 = vector.load %arg4[%c12, %c0_39, %c0_40] : memref<40x1x128xf32, #tpu.memory_space<vmem>>, vector<1x1x128xf32>
    %129 = vector.shape_cast %128 : vector<1x1x128xf32> to vector<1x128xf32>
    %130 = vector.shape_cast %93 : vector<1x128xf32> to vector<1x1x128xf32>
    tpu.vector_store %arg4[%c12, %c0_39, %c0_40], %130 {strides = array<i32>} : memref<40x1x128xf32, #tpu.memory_space<vmem>>, vector<1x1x128xf32>,
    %c13 = arith.constant 13 : index
    %c0_41 = arith.constant 0 : index
    %c0_42 = arith.constant 0 : index
    %131 = vector.load %arg4[%c13, %c0_41, %c0_42] : memref<40x1x128xf32, #tpu.memory_space<vmem>>, vector<1x1x128xf32>
    %132 = vector.shape_cast %131 : vector<1x1x128xf32> to vector<1x128xf32>
    %133 = vector.shape_cast %95 : vector<1x128xf32> to vector<1x1x128xf32>
    tpu.vector_store %arg4[%c13, %c0_41, %c0_42], %133 {strides = array<i32>} : memref<40x1x128xf32, #tpu.memory_space<vmem>>, vector<1x1x128xf32>,
    %c22 = arith.constant 22 : index
    %c0_43 = arith.constant 0 : index
    %c0_44 = arith.constant 0 : index
    %134 = vector.load %arg4[%c22, %c0_43, %c0_44] : memref<40x1x128xf32, #tpu.memory_space<vmem>>, vector<1x1x128xf32>
    %135 = vector.shape_cast %134 : vector<1x1x128xf32> to vector<1x128xf32>
    %136 = vector.shape_cast %117 : vector<1x128xf32> to vector<1x1x128xf32>
    tpu.vector_store %arg4[%c22, %c0_43, %c0_44], %136 {strides = array<i32>} : memref<40x1x128xf32, #tpu.memory_space<vmem>>, vector<1x1x128xf32>,
    %c23 = arith.constant 23 : index
    %c0_45 = arith.constant 0 : index
    %c0_46 = arith.constant 0 : index
    %137 = vector.load %arg4[%c23, %c0_45, %c0_46] : memref<40x1x128xf32, #tpu.memory_space<vmem>>, vector<1x1x128xf32>
    %138 = vector.shape_cast %137 : vector<1x1x128xf32> to vector<1x128xf32>
    %139 = vector.shape_cast %121 : vector<1x128xf32> to vector<1x1x128xf32>
    tpu.vector_store %arg4[%c23, %c0_45, %c0_46], %139 {strides = array<i32>} : memref<40x1x128xf32, #tpu.memory_space<vmem>>, vector<1x1x128xf32>,
    %c32 = arith.constant 32 : index
    %c0_47 = arith.constant 0 : index
    %c0_48 = arith.constant 0 : index
    %140 = vector.load %arg4[%c32, %c0_47, %c0_48] : memref<40x1x128xf32, #tpu.memory_space<vmem>>, vector<1x1x128xf32>
    %141 = vector.shape_cast %140 : vector<1x1x128xf32> to vector<1x128xf32>
    %142 = vector.shape_cast %111 : vector<1x128xf32> to vector<1x1x128xf32>
    tpu.vector_store %arg4[%c32, %c0_47, %c0_48], %142 {strides = array<i32>} : memref<40x1x128xf32, #tpu.memory_space<vmem>>, vector<1x1x128xf32>,
    %c33 = arith.constant 33 : index
    %c0_49 = arith.constant 0 : index
    %c0_50 = arith.constant 0 : index
    %143 = vector.load %arg4[%c33, %c0_49, %c0_50] : memref<40x1x128xf32, #tpu.memory_space<vmem>>, vector<1x1x128xf32>
    %144 = vector.shape_cast %143 : vector<1x1x128xf32> to vector<1x128xf32>
    %145 = vector.shape_cast %113 : vector<1x128xf32> to vector<1x1x128xf32>
    tpu.vector_store %arg4[%c33, %c0_49, %c0_50], %145 {strides = array<i32>} : memref<40x1x128xf32, #tpu.memory_space<vmem>>, vector<1x1x128xf32>,
    %146 = vector.extract_strided_slice %0 {offsets = [4, 0, 0], sizes = [1, 1, 128], strides = [1, 1, 1]} : vector<10x1x128xf32> to vector<1x1x128xf32>
    %147 = vector.shape_cast %146 : vector<1x1x128xf32> to vector<1x128xf32>
    %148 = vector.extract_strided_slice %0 {offsets = [5, 0, 0], sizes = [1, 1, 128], strides = [1, 1, 1]} : vector<10x1x128xf32> to vector<1x1x128xf32>
    %149 = vector.shape_cast %148 : vector<1x1x128xf32> to vector<1x128xf32>
    %150 = arith.mulf %147, %2 : vector<1x128xf32>
    %151 = arith.mulf %149, %4 : vector<1x128xf32>
    %152 = arith.addf %150, %151 : vector<1x128xf32>
    %153 = arith.mulf %147, %6 : vector<1x128xf32>
    %154 = arith.mulf %149, %8 : vector<1x128xf32>
    %155 = arith.addf %153, %154 : vector<1x128xf32>
    %156 = arith.addf %93, %152 : vector<1x128xf32>
    %157 = arith.subf %156, %99 : vector<1x128xf32>
    %158 = arith.addf %95, %155 : vector<1x128xf32>
    %159 = arith.subf %158, %103 : vector<1x128xf32>
    %cst_51 = arith.constant 1.000000e+00 : f32
    %160 = vector.broadcast %cst_51 : f32 to vector<1x128xf32>
    %161 = arith.cmpf ogt, %157, %160 : vector<1x128xf32>
    %162 = arith.extui %161 : vector<1x128xi1> to vector<1x128xi32>
    %163 = arith.sitofp %162 : vector<1x128xi32> to vector<1x128xf32>
    %cst_52 = arith.constant 1.000000e+00 : f32
    %164 = vector.broadcast %cst_52 : f32 to vector<1x128xf32>
    %165 = arith.cmpf ogt, %159, %164 : vector<1x128xf32>
    %166 = arith.extui %165 : vector<1x128xi1> to vector<1x128xi32>
    %167 = arith.sitofp %166 : vector<1x128xi32> to vector<1x128xf32>
    %168 = arith.mulf %163, %10 : vector<1x128xf32>
    %169 = arith.mulf %167, %12 : vector<1x128xf32>
    %170 = arith.addf %168, %169 : vector<1x128xf32>
    %171 = arith.mulf %163, %14 : vector<1x128xf32>
    %172 = arith.mulf %167, %16 : vector<1x128xf32>
    %173 = arith.addf %171, %172 : vector<1x128xf32>
    %174 = arith.addf %111, %170 : vector<1x128xf32>
    %175 = arith.subf %174, %117 : vector<1x128xf32>
    %176 = arith.addf %113, %173 : vector<1x128xf32>
    %177 = arith.subf %176, %121 : vector<1x128xf32>
    %cst_53 = arith.constant 1.000000e+00 : f32
    %178 = vector.broadcast %cst_53 : f32 to vector<1x128xf32>
    %179 = arith.cmpf ogt, %175, %178 : vector<1x128xf32>
    %180 = arith.extui %179 : vector<1x128xi1> to vector<1x128xi32>
    %181 = arith.sitofp %180 : vector<1x128xi32> to vector<1x128xf32>
    %cst_54 = arith.constant 1.000000e+00 : f32
    %182 = vector.broadcast %cst_54 : f32 to vector<1x128xf32>
    %183 = arith.cmpf ogt, %177, %182 : vector<1x128xf32>
    %184 = arith.extui %183 : vector<1x128xi1> to vector<1x128xi32>
    %185 = arith.sitofp %184 : vector<1x128xi32> to vector<1x128xf32>
    %c4 = arith.constant 4 : index
    %c0_55 = arith.constant 0 : index
    %c0_56 = arith.constant 0 : index
    %186 = vector.load %arg4[%c4, %c0_55, %c0_56] : memref<40x1x128xf32, #tpu.memory_space<vmem>>, vector<1x1x128xf32>
    %187 = vector.shape_cast %186 : vector<1x1x128xf32> to vector<1x128xf32>
    %188 = vector.shape_cast %163 : vector<1x128xf32> to vector<1x1x128xf32>
    tpu.vector_store %arg4[%c4, %c0_55, %c0_56], %188 {strides = array<i32>} : memref<40x1x128xf32, #tpu.memory_space<vmem>>, vector<1x1x128xf32>,
    %c5 = arith.constant 5 : index
    %c0_57 = arith.constant 0 : index
    %c0_58 = arith.constant 0 : index
    %189 = vector.load %arg4[%c5, %c0_57, %c0_58] : memref<40x1x128xf32, #tpu.memory_space<vmem>>, vector<1x1x128xf32>
    %190 = vector.shape_cast %189 : vector<1x1x128xf32> to vector<1x128xf32>
    %191 = vector.shape_cast %167 : vector<1x128xf32> to vector<1x1x128xf32>
    tpu.vector_store %arg4[%c5, %c0_57, %c0_58], %191 {strides = array<i32>} : memref<40x1x128xf32, #tpu.memory_space<vmem>>, vector<1x1x128xf32>,
    %c14 = arith.constant 14 : index
    %c0_59 = arith.constant 0 : index
    %c0_60 = arith.constant 0 : index
    %192 = vector.load %arg4[%c14, %c0_59, %c0_60] : memref<40x1x128xf32, #tpu.memory_space<vmem>>, vector<1x1x128xf32>
    %193 = vector.shape_cast %192 : vector<1x1x128xf32> to vector<1x128xf32>
    %194 = vector.shape_cast %157 : vector<1x128xf32> to vector<1x1x128xf32>
    tpu.vector_store %arg4[%c14, %c0_59, %c0_60], %194 {strides = array<i32>} : memref<40x1x128xf32, #tpu.memory_space<vmem>>, vector<1x1x128xf32>,
    %c15 = arith.constant 15 : index
    %c0_61 = arith.constant 0 : index
    %c0_62 = arith.constant 0 : index
    %195 = vector.load %arg4[%c15, %c0_61, %c0_62] : memref<40x1x128xf32, #tpu.memory_space<vmem>>, vector<1x1x128xf32>
    %196 = vector.shape_cast %195 : vector<1x1x128xf32> to vector<1x128xf32>
    %197 = vector.shape_cast %159 : vector<1x128xf32> to vector<1x1x128xf32>
    tpu.vector_store %arg4[%c15, %c0_61, %c0_62], %197 {strides = array<i32>} : memref<40x1x128xf32, #tpu.memory_space<vmem>>, vector<1x1x128xf32>,
    %c24 = arith.constant 24 : index
    %c0_63 = arith.constant 0 : index
    %c0_64 = arith.constant 0 : index
    %198 = vector.load %arg4[%c24, %c0_63, %c0_64] : memref<40x1x128xf32, #tpu.memory_space<vmem>>, vector<1x1x128xf32>
    %199 = vector.shape_cast %198 : vector<1x1x128xf32> to vector<1x128xf32>
    %200 = vector.shape_cast %181 : vector<1x128xf32> to vector<1x1x128xf32>
    tpu.vector_store %arg4[%c24, %c0_63, %c0_64], %200 {strides = array<i32>} : memref<40x1x128xf32, #tpu.memory_space<vmem>>, vector<1x1x128xf32>,
    %c25 = arith.constant 25 : index
    %c0_65 = arith.constant 0 : index
    %c0_66 = arith.constant 0 : index
    %201 = vector.load %arg4[%c25, %c0_65, %c0_66] : memref<40x1x128xf32, #tpu.memory_space<vmem>>, vector<1x1x128xf32>
    %202 = vector.shape_cast %201 : vector<1x1x128xf32> to vector<1x128xf32>
    %203 = vector.shape_cast %185 : vector<1x128xf32> to vector<1x1x128xf32>
    tpu.vector_store %arg4[%c25, %c0_65, %c0_66], %203 {strides = array<i32>} : memref<40x1x128xf32, #tpu.memory_space<vmem>>, vector<1x1x128xf32>,
    %c34 = arith.constant 34 : index
    %c0_67 = arith.constant 0 : index
    %c0_68 = arith.constant 0 : index
    %204 = vector.load %arg4[%c34, %c0_67, %c0_68] : memref<40x1x128xf32, #tpu.memory_space<vmem>>, vector<1x1x128xf32>
    %205 = vector.shape_cast %204 : vector<1x1x128xf32> to vector<1x128xf32>
    %206 = vector.shape_cast %175 : vector<1x128xf32> to vector<1x1x128xf32>
    tpu.vector_store %arg4[%c34, %c0_67, %c0_68], %206 {strides = array<i32>} : memref<40x1x128xf32, #tpu.memory_space<vmem>>, vector<1x1x128xf32>,
    %c35 = arith.constant 35 : index
    %c0_69 = arith.constant 0 : index
    %c0_70 = arith.constant 0 : index
    %207 = vector.load %arg4[%c35, %c0_69, %c0_70] : memref<40x1x128xf32, #tpu.memory_space<vmem>>, vector<1x1x128xf32>
    %208 = vector.shape_cast %207 : vector<1x1x128xf32> to vector<1x128xf32>
    %209 = vector.shape_cast %177 : vector<1x128xf32> to vector<1x1x128xf32>
    tpu.vector_store %arg4[%c35, %c0_69, %c0_70], %209 {strides = array<i32>} : memref<40x1x128xf32, #tpu.memory_space<vmem>>, vector<1x1x128xf32>,
    %210 = vector.extract_strided_slice %0 {offsets = [6, 0, 0], sizes = [1, 1, 128], strides = [1, 1, 1]} : vector<10x1x128xf32> to vector<1x1x128xf32>
    %211 = vector.shape_cast %210 : vector<1x1x128xf32> to vector<1x128xf32>
    %212 = vector.extract_strided_slice %0 {offsets = [7, 0, 0], sizes = [1, 1, 128], strides = [1, 1, 1]} : vector<10x1x128xf32> to vector<1x1x128xf32>
    %213 = vector.shape_cast %212 : vector<1x1x128xf32> to vector<1x128xf32>
    %214 = arith.mulf %211, %2 : vector<1x128xf32>
    %215 = arith.mulf %213, %4 : vector<1x128xf32>
    %216 = arith.addf %214, %215 : vector<1x128xf32>
    %217 = arith.mulf %211, %6 : vector<1x128xf32>
    %218 = arith.mulf %213, %8 : vector<1x128xf32>
    %219 = arith.addf %217, %218 : vector<1x128xf32>
    %220 = arith.addf %157, %216 : vector<1x128xf32>
    %221 = arith.subf %220, %163 : vector<1x128xf32>
    %222 = arith.addf %159, %219 : vector<1x128xf32>
    %223 = arith.subf %222, %167 : vector<1x128xf32>
    %cst_71 = arith.constant 1.000000e+00 : f32
    %224 = vector.broadcast %cst_71 : f32 to vector<1x128xf32>
    %225 = arith.cmpf ogt, %221, %224 : vector<1x128xf32>
    %226 = arith.extui %225 : vector<1x128xi1> to vector<1x128xi32>
    %227 = arith.sitofp %226 : vector<1x128xi32> to vector<1x128xf32>
    %cst_72 = arith.constant 1.000000e+00 : f32
    %228 = vector.broadcast %cst_72 : f32 to vector<1x128xf32>
    %229 = arith.cmpf ogt, %223, %228 : vector<1x128xf32>
    %230 = arith.extui %229 : vector<1x128xi1> to vector<1x128xi32>
    %231 = arith.sitofp %230 : vector<1x128xi32> to vector<1x128xf32>
    %232 = arith.mulf %227, %10 : vector<1x128xf32>
    %233 = arith.mulf %231, %12 : vector<1x128xf32>
    %234 = arith.addf %232, %233 : vector<1x128xf32>
    %235 = arith.mulf %227, %14 : vector<1x128xf32>
    %236 = arith.mulf %231, %16 : vector<1x128xf32>
    %237 = arith.addf %235, %236 : vector<1x128xf32>
    %238 = arith.addf %175, %234 : vector<1x128xf32>
    %239 = arith.subf %238, %181 : vector<1x128xf32>
    %240 = arith.addf %177, %237 : vector<1x128xf32>
    %241 = arith.subf %240, %185 : vector<1x128xf32>
    %cst_73 = arith.constant 1.000000e+00 : f32
    %242 = vector.broadcast %cst_73 : f32 to vector<1x128xf32>
    %243 = arith.cmpf ogt, %239, %242 : vector<1x128xf32>
    %244 = arith.extui %243 : vector<1x128xi1> to vector<1x128xi32>
    %245 = arith.sitofp %244 : vector<1x128xi32> to vector<1x128xf32>
    %cst_74 = arith.constant 1.000000e+00 : f32
    %246 = vector.broadcast %cst_74 : f32 to vector<1x128xf32>
    %247 = arith.cmpf ogt, %241, %246 : vector<1x128xf32>
    %248 = arith.extui %247 : vector<1x128xi1> to vector<1x128xi32>
    %249 = arith.sitofp %248 : vector<1x128xi32> to vector<1x128xf32>
    %c6 = arith.constant 6 : index
    %c0_75 = arith.constant 0 : index
    %c0_76 = arith.constant 0 : index
    %250 = vector.load %arg4[%c6, %c0_75, %c0_76] : memref<40x1x128xf32, #tpu.memory_space<vmem>>, vector<1x1x128xf32>
    %251 = vector.shape_cast %250 : vector<1x1x128xf32> to vector<1x128xf32>
    %252 = vector.shape_cast %227 : vector<1x128xf32> to vector<1x1x128xf32>
    tpu.vector_store %arg4[%c6, %c0_75, %c0_76], %252 {strides = array<i32>} : memref<40x1x128xf32, #tpu.memory_space<vmem>>, vector<1x1x128xf32>,
    %c7 = arith.constant 7 : index
    %c0_77 = arith.constant 0 : index
    %c0_78 = arith.constant 0 : index
    %253 = vector.load %arg4[%c7, %c0_77, %c0_78] : memref<40x1x128xf32, #tpu.memory_space<vmem>>, vector<1x1x128xf32>
    %254 = vector.shape_cast %253 : vector<1x1x128xf32> to vector<1x128xf32>
    %255 = vector.shape_cast %231 : vector<1x128xf32> to vector<1x1x128xf32>
    tpu.vector_store %arg4[%c7, %c0_77, %c0_78], %255 {strides = array<i32>} : memref<40x1x128xf32, #tpu.memory_space<vmem>>, vector<1x1x128xf32>,
    %c16 = arith.constant 16 : index
    %c0_79 = arith.constant 0 : index
    %c0_80 = arith.constant 0 : index
    %256 = vector.load %arg4[%c16, %c0_79, %c0_80] : memref<40x1x128xf32, #tpu.memory_space<vmem>>, vector<1x1x128xf32>
    %257 = vector.shape_cast %256 : vector<1x1x128xf32> to vector<1x128xf32>
    %258 = vector.shape_cast %221 : vector<1x128xf32> to vector<1x1x128xf32>
    tpu.vector_store %arg4[%c16, %c0_79, %c0_80], %258 {strides = array<i32>} : memref<40x1x128xf32, #tpu.memory_space<vmem>>, vector<1x1x128xf32>,
    %c17 = arith.constant 17 : index
    %c0_81 = arith.constant 0 : index
    %c0_82 = arith.constant 0 : index
    %259 = vector.load %arg4[%c17, %c0_81, %c0_82] : memref<40x1x128xf32, #tpu.memory_space<vmem>>, vector<1x1x128xf32>
    %260 = vector.shape_cast %259 : vector<1x1x128xf32> to vector<1x128xf32>
    %261 = vector.shape_cast %223 : vector<1x128xf32> to vector<1x1x128xf32>
    tpu.vector_store %arg4[%c17, %c0_81, %c0_82], %261 {strides = array<i32>} : memref<40x1x128xf32, #tpu.memory_space<vmem>>, vector<1x1x128xf32>,
    %c26 = arith.constant 26 : index
    %c0_83 = arith.constant 0 : index
    %c0_84 = arith.constant 0 : index
    %262 = vector.load %arg4[%c26, %c0_83, %c0_84] : memref<40x1x128xf32, #tpu.memory_space<vmem>>, vector<1x1x128xf32>
    %263 = vector.shape_cast %262 : vector<1x1x128xf32> to vector<1x128xf32>
    %264 = vector.shape_cast %245 : vector<1x128xf32> to vector<1x1x128xf32>
    tpu.vector_store %arg4[%c26, %c0_83, %c0_84], %264 {strides = array<i32>} : memref<40x1x128xf32, #tpu.memory_space<vmem>>, vector<1x1x128xf32>,
    %c27 = arith.constant 27 : index
    %c0_85 = arith.constant 0 : index
    %c0_86 = arith.constant 0 : index
    %265 = vector.load %arg4[%c27, %c0_85, %c0_86] : memref<40x1x128xf32, #tpu.memory_space<vmem>>, vector<1x1x128xf32>
    %266 = vector.shape_cast %265 : vector<1x1x128xf32> to vector<1x128xf32>
    %267 = vector.shape_cast %249 : vector<1x128xf32> to vector<1x1x128xf32>
    tpu.vector_store %arg4[%c27, %c0_85, %c0_86], %267 {strides = array<i32>} : memref<40x1x128xf32, #tpu.memory_space<vmem>>, vector<1x1x128xf32>,
    %c36 = arith.constant 36 : index
    %c0_87 = arith.constant 0 : index
    %c0_88 = arith.constant 0 : index
    %268 = vector.load %arg4[%c36, %c0_87, %c0_88] : memref<40x1x128xf32, #tpu.memory_space<vmem>>, vector<1x1x128xf32>
    %269 = vector.shape_cast %268 : vector<1x1x128xf32> to vector<1x128xf32>
    %270 = vector.shape_cast %239 : vector<1x128xf32> to vector<1x1x128xf32>
    tpu.vector_store %arg4[%c36, %c0_87, %c0_88], %270 {strides = array<i32>} : memref<40x1x128xf32, #tpu.memory_space<vmem>>, vector<1x1x128xf32>,
    %c37 = arith.constant 37 : index
    %c0_89 = arith.constant 0 : index
    %c0_90 = arith.constant 0 : index
    %271 = vector.load %arg4[%c37, %c0_89, %c0_90] : memref<40x1x128xf32, #tpu.memory_space<vmem>>, vector<1x1x128xf32>
    %272 = vector.shape_cast %271 : vector<1x1x128xf32> to vector<1x128xf32>
    %273 = vector.shape_cast %241 : vector<1x128xf32> to vector<1x1x128xf32>
    tpu.vector_store %arg4[%c37, %c0_89, %c0_90], %273 {strides = array<i32>} : memref<40x1x128xf32, #tpu.memory_space<vmem>>, vector<1x1x128xf32>,
    %274 = vector.extract_strided_slice %0 {offsets = [8, 0, 0], sizes = [1, 1, 128], strides = [1, 1, 1]} : vector<10x1x128xf32> to vector<1x1x128xf32>
    %275 = vector.shape_cast %274 : vector<1x1x128xf32> to vector<1x128xf32>
    %276 = vector.extract_strided_slice %0 {offsets = [9, 0, 0], sizes = [1, 1, 128], strides = [1, 1, 1]} : vector<10x1x128xf32> to vector<1x1x128xf32>
    %277 = vector.shape_cast %276 : vector<1x1x128xf32> to vector<1x128xf32>
    %278 = arith.mulf %275, %2 : vector<1x128xf32>
    %279 = arith.mulf %277, %4 : vector<1x128xf32>
    %280 = arith.addf %278, %279 : vector<1x128xf32>
    %281 = arith.mulf %275, %6 : vector<1x128xf32>
    %282 = arith.mulf %277, %8 : vector<1x128xf32>
    %283 = arith.addf %281, %282 : vector<1x128xf32>
    %284 = arith.addf %221, %280 : vector<1x128xf32>
    %285 = arith.subf %284, %227 : vector<1x128xf32>
    %286 = arith.addf %223, %283 : vector<1x128xf32>
    %287 = arith.subf %286, %231 : vector<1x128xf32>
    %cst_91 = arith.constant 1.000000e+00 : f32
    %288 = vector.broadcast %cst_91 : f32 to vector<1x128xf32>
    %289 = arith.cmpf ogt, %285, %288 : vector<1x128xf32>
    %290 = arith.extui %289 : vector<1x128xi1> to vector<1x128xi32>
    %291 = arith.sitofp %290 : vector<1x128xi32> to vector<1x128xf32>
    %cst_92 = arith.constant 1.000000e+00 : f32
    %292 = vector.broadcast %cst_92 : f32 to vector<1x128xf32>
    %293 = arith.cmpf ogt, %287, %292 : vector<1x128xf32>
    %294 = arith.extui %293 : vector<1x128xi1> to vector<1x128xi32>
    %295 = arith.sitofp %294 : vector<1x128xi32> to vector<1x128xf32>
    %296 = arith.mulf %291, %10 : vector<1x128xf32>
    %297 = arith.mulf %295, %12 : vector<1x128xf32>
    %298 = arith.addf %296, %297 : vector<1x128xf32>
    %299 = arith.mulf %291, %14 : vector<1x128xf32>
    %300 = arith.mulf %295, %16 : vector<1x128xf32>
    %301 = arith.addf %299, %300 : vector<1x128xf32>
    %302 = arith.addf %239, %298 : vector<1x128xf32>
    %303 = arith.subf %302, %245 : vector<1x128xf32>
    %304 = arith.addf %241, %301 : vector<1x128xf32>
    %305 = arith.subf %304, %249 : vector<1x128xf32>
    %cst_93 = arith.constant 1.000000e+00 : f32
    %306 = vector.broadcast %cst_93 : f32 to vector<1x128xf32>
    %307 = arith.cmpf ogt, %303, %306 : vector<1x128xf32>
    %308 = arith.extui %307 : vector<1x128xi1> to vector<1x128xi32>
    %309 = arith.sitofp %308 : vector<1x128xi32> to vector<1x128xf32>
    %cst_94 = arith.constant 1.000000e+00 : f32
    %310 = vector.broadcast %cst_94 : f32 to vector<1x128xf32>
    %311 = arith.cmpf ogt, %305, %310 : vector<1x128xf32>
    %312 = arith.extui %311 : vector<1x128xi1> to vector<1x128xi32>
    %313 = arith.sitofp %312 : vector<1x128xi32> to vector<1x128xf32>
    %c8 = arith.constant 8 : index
    %c0_95 = arith.constant 0 : index
    %c0_96 = arith.constant 0 : index
    %314 = vector.load %arg4[%c8, %c0_95, %c0_96] : memref<40x1x128xf32, #tpu.memory_space<vmem>>, vector<1x1x128xf32>
    %315 = vector.shape_cast %314 : vector<1x1x128xf32> to vector<1x128xf32>
    %316 = vector.shape_cast %291 : vector<1x128xf32> to vector<1x1x128xf32>
    tpu.vector_store %arg4[%c8, %c0_95, %c0_96], %316 {strides = array<i32>} : memref<40x1x128xf32, #tpu.memory_space<vmem>>, vector<1x1x128xf32>,
    %c9 = arith.constant 9 : index
    %c0_97 = arith.constant 0 : index
    %c0_98 = arith.constant 0 : index
    %317 = vector.load %arg4[%c9, %c0_97, %c0_98] : memref<40x1x128xf32, #tpu.memory_space<vmem>>, vector<1x1x128xf32>
    %318 = vector.shape_cast %317 : vector<1x1x128xf32> to vector<1x128xf32>
    %319 = vector.shape_cast %295 : vector<1x128xf32> to vector<1x1x128xf32>
    tpu.vector_store %arg4[%c9, %c0_97, %c0_98], %319 {strides = array<i32>} : memref<40x1x128xf32, #tpu.memory_space<vmem>>, vector<1x1x128xf32>,
    %c18 = arith.constant 18 : index
    %c0_99 = arith.constant 0 : index
    %c0_100 = arith.constant 0 : index
    %320 = vector.load %arg4[%c18, %c0_99, %c0_100] : memref<40x1x128xf32, #tpu.memory_space<vmem>>, vector<1x1x128xf32>
    %321 = vector.shape_cast %320 : vector<1x1x128xf32> to vector<1x128xf32>
    %322 = vector.shape_cast %285 : vector<1x128xf32> to vector<1x1x128xf32>
    tpu.vector_store %arg4[%c18, %c0_99, %c0_100], %322 {strides = array<i32>} : memref<40x1x128xf32, #tpu.memory_space<vmem>>, vector<1x1x128xf32>,
    %c19 = arith.constant 19 : index
    %c0_101 = arith.constant 0 : index
    %c0_102 = arith.constant 0 : index
    %323 = vector.load %arg4[%c19, %c0_101, %c0_102] : memref<40x1x128xf32, #tpu.memory_space<vmem>>, vector<1x1x128xf32>
    %324 = vector.shape_cast %323 : vector<1x1x128xf32> to vector<1x128xf32>
    %325 = vector.shape_cast %287 : vector<1x128xf32> to vector<1x1x128xf32>
    tpu.vector_store %arg4[%c19, %c0_101, %c0_102], %325 {strides = array<i32>} : memref<40x1x128xf32, #tpu.memory_space<vmem>>, vector<1x1x128xf32>,
    %c28 = arith.constant 28 : index
    %c0_103 = arith.constant 0 : index
    %c0_104 = arith.constant 0 : index
    %326 = vector.load %arg4[%c28, %c0_103, %c0_104] : memref<40x1x128xf32, #tpu.memory_space<vmem>>, vector<1x1x128xf32>
    %327 = vector.shape_cast %326 : vector<1x1x128xf32> to vector<1x128xf32>
    %328 = vector.shape_cast %309 : vector<1x128xf32> to vector<1x1x128xf32>
    tpu.vector_store %arg4[%c28, %c0_103, %c0_104], %328 {strides = array<i32>} : memref<40x1x128xf32, #tpu.memory_space<vmem>>, vector<1x1x128xf32>,
    %c29 = arith.constant 29 : index
    %c0_105 = arith.constant 0 : index
    %c0_106 = arith.constant 0 : index
    %329 = vector.load %arg4[%c29, %c0_105, %c0_106] : memref<40x1x128xf32, #tpu.memory_space<vmem>>, vector<1x1x128xf32>
    %330 = vector.shape_cast %329 : vector<1x1x128xf32> to vector<1x128xf32>
    %331 = vector.shape_cast %313 : vector<1x128xf32> to vector<1x1x128xf32>
    tpu.vector_store %arg4[%c29, %c0_105, %c0_106], %331 {strides = array<i32>} : memref<40x1x128xf32, #tpu.memory_space<vmem>>, vector<1x1x128xf32>,
    %c38 = arith.constant 38 : index
    %c0_107 = arith.constant 0 : index
    %c0_108 = arith.constant 0 : index
    %332 = vector.load %arg4[%c38, %c0_107, %c0_108] : memref<40x1x128xf32, #tpu.memory_space<vmem>>, vector<1x1x128xf32>
    %333 = vector.shape_cast %332 : vector<1x1x128xf32> to vector<1x128xf32>
    %334 = vector.shape_cast %303 : vector<1x128xf32> to vector<1x1x128xf32>
    tpu.vector_store %arg4[%c38, %c0_107, %c0_108], %334 {strides = array<i32>} : memref<40x1x128xf32, #tpu.memory_space<vmem>>, vector<1x1x128xf32>,
    %c39 = arith.constant 39 : index
    %c0_109 = arith.constant 0 : index
    %c0_110 = arith.constant 0 : index
    %335 = vector.load %arg4[%c39, %c0_109, %c0_110] : memref<40x1x128xf32, #tpu.memory_space<vmem>>, vector<1x1x128xf32>
    %336 = vector.shape_cast %335 : vector<1x1x128xf32> to vector<1x128xf32>
    %337 = vector.shape_cast %305 : vector<1x128xf32> to vector<1x1x128xf32>
    tpu.vector_store %arg4[%c39, %c0_109, %c0_110], %337 {strides = array<i32>} : memref<40x1x128xf32, #tpu.memory_space<vmem>>, vector<1x1x128xf32>,
    return
  }
  func.func @transform_0(%arg0: i32) -> (i32, i32, i32) {
    %c0_i32 = arith.constant 0 : i32
    %c0_i32_0 = arith.constant 0 : i32
    %c0_i32_1 = arith.constant 0 : i32
    return %c0_i32, %arg0, %c0_i32_0 : i32, i32, i32
  }
  func.func @transform_1(%arg0: i32) -> i32 {
    %c0_i32 = arith.constant 0 : i32
    %c0_i32_0 = arith.constant 0 : i32
    return %c0_i32 : i32
  }
  func.func @transform_2(%arg0: i32) -> i32 {
    %c0_i32 = arith.constant 0 : i32
    %c0_i32_0 = arith.constant 0 : i32
    return %c0_i32 : i32
  }
  func.func @transform_3(%arg0: i32) -> (i32, i32, i32) {
    %c0_i32 = arith.constant 0 : i32
    %c0_i32_0 = arith.constant 0 : i32
    %c0_i32_1 = arith.constant 0 : i32
    return %c0_i32, %arg0, %c0_i32_0 : i32, i32, i32
  }
}

</mosaic_0001>

<llo_original>
// kernel: tpu_custom_call.1
$region0: #{tpu_custom_call.1}
  #allocation0 [shape = 'u32[]', space=smem, size = 0x4, offset = 0x4, fixed_abs, tag = 'smem constant byte address 0x4 - core index']
  #allocation1 [shape = 'u32[72,128]{1,0:T(1,128)}', space=vmem, size = 0x9000, scoped, tag = 'internal scratch']
  %s0 = inlined_call_operand.hbm [shape: f32[10,1,128], index: 0, kind: input, shape index: {}]
  %s1 = inlined_call_operand.hbm [shape: f32[4], index: 1, kind: input, shape index: {}]
  %s2 = inlined_call_operand.vmem [shape: f32[4], index: 2, kind: input, shape index: {}]
  %s3 = inlined_call_operand.hbm [shape: f32[40,1,128], index: 3, kind: output, shape index: {}]
  %s4 = sld [smem:[#allocation0]]
  $region34: #{tpu_custom_call.1} parent=0
    _
  %s6 = ssub.s32 1, %s4
  %s7 = scalar_select 0, %s6, %s4
  $region1: #{tpu_custom_call.1} parent=0
    #allocation2 [shape = 'u8[5120]{0}', space=vmem, size = 0x1400, scoped, tag = 'input window, operand 0, single buffered']
    #allocation3 [shape = 's32[1]{0}', space=sflag, size = 0x4, scoped, tag = 'scoped memory for tpu_custom_call.1']
    #allocation4 [shape = 's32[1]{0}', space=sflag, size = 0x4, scoped, tag = 'scoped memory for tpu_custom_call.1']
    #allocation5 [shape = 's32[1]{0}', space=sflag, size = 0x4, scoped, tag = 'scoped memory for tpu_custom_call.1']
    #allocation6 [shape = 's32[1]{0}', space=sflag, size = 0x4, scoped, tag = 'scoped memory for tpu_custom_call.1']
    #allocation7 [shape = 'u8[512]{0}', space=smem, size = 0x200, scoped, tag = 'input window, operand 1, single buffered']
    #allocation8 [shape = 'u8[512]{0}', space=smem, size = 0x200, scoped, tag = 'input window, operand 2, single buffered']
    #allocation9 [shape = 'u8[20480]{0}', space=vmem, size = 0x5000, scoped, tag = 'output window, operand 0, single buffered']
    %8 = vsyncpa [#allocation3], 0
    %9 = vsyncpa [#allocation5], 0
    %10 = vsyncpa [#allocation6], 0
    %11 = vsyncpa [#allocation4], 0
    // Predicated region
    $region2: #{tpu_custom_call.1} parent=1 // pred_check
      _
    $region3: #{tpu_custom_call.1} parent=1 // pred_check_branch
      %13 = sbr.rel (0) target = $region5
    $region4: #{tpu_custom_call.1} parent=1 // pred_region
      %15 = vsyncadd [#allocation3], 0
      %s16 = sshll.u32 %s0, 4
      %s17 = int_to_ptr.hbm [resolvable:$true] %s16
      %s18 = sshll.u32 [#allocation2], 4
      %s19 = int_to_ptr.vmem [resolvable:$true] %s18
      %24 = dma.hbm_to_vmem [thread:$0]  %s17, 160, %s19, [#allocation3], 16, 16, 1
    $region5: #{tpu_custom_call.1} parent=1 // pred_fallthru
      _
    // Predicated region
    $region6: #{tpu_custom_call.1} parent=1 // pred_check
      _
    $region7: #{tpu_custom_call.1} parent=1 // pred_check_branch
      %26 = sbr.rel (0) target = $region9
    $region8: #{tpu_custom_call.1} parent=1 // pred_region
      %28 = vsyncadd [#allocation5], 0
      %s30 = sshll.u32 %s1, 4
      %s31 = int_to_ptr.hbm [resolvable:$true] %s30
      %33 = dma.hbm_to_smem %s31, 16, [#allocation7], [#allocation5]
    $region9: #{tpu_custom_call.1} parent=1 // pred_fallthru
      _
    // Predicated region
    $region10: #{tpu_custom_call.1} parent=1 // pred_check
      _
    $region11: #{tpu_custom_call.1} parent=1 // pred_check_branch
      %35 = sbr.rel (0) target = $region13
    $region12: #{tpu_custom_call.1} parent=1 // pred_region
      %37 = vsyncadd [#allocation6], 0
      %s39 = sshll.u32 %s2, 4
      %s40 = int_to_ptr.vmem [resolvable:$true] %s39
      %42 = dma.vmem_to_smem %s40, 16, [#allocation8], [#allocation6]
    $region13: #{tpu_custom_call.1} parent=1 // pred_fallthru
      _
    // Predicated region
    $region14: #{tpu_custom_call.1} parent=1 // pred_check
      _
    $region15: #{tpu_custom_call.1} parent=1 // pred_check_branch
      %44 = sbr.rel (0) target = $region17
    $region16: #{tpu_custom_call.1} parent=1 // pred_region
      %46 = dma.done [#allocation3], 160
    $region17: #{tpu_custom_call.1} parent=1 // pred_fallthru
      _
    // Predicated region
    $region18: #{tpu_custom_call.1} parent=1 // pred_check
      _
    $region19: #{tpu_custom_call.1} parent=1 // pred_check_branch
      %48 = sbr.rel (0) target = $region21
    $region20: #{tpu_custom_call.1} parent=1 // pred_region
      %50 = dma.done [#allocation5], 16
    $region21: #{tpu_custom_call.1} parent=1 // pred_fallthru
      _
    // Predicated region
    $region22: #{tpu_custom_call.1} parent=1 // pred_check
      _
    $region23: #{tpu_custom_call.1} parent=1 // pred_check_branch
      %52 = sbr.rel (0) target = $region25
    $region24: #{tpu_custom_call.1} parent=1 // pred_region
      %54 = dma.done [#allocation6], 16
    $region25: #{tpu_custom_call.1} parent=1 // pred_fallthru
      _
    %55 = sfence
    %v56 = vld [vmem:[#allocation2] sm:$0x1]
    %v57 = vld [vmem:[#allocation2 + $0x1] sm:$0x1]
    %v58 = vld [vmem:[#allocation2 + $0x2] sm:$0x1]
    %v59 = vld [vmem:[#allocation2 + $0x3] sm:$0x1]
    %v60 = vld [vmem:[#allocation2 + $0x4] sm:$0x1]
    %v61 = vld [vmem:[#allocation2 + $0x5] sm:$0x1]
    %v62 = vld [vmem:[#allocation2 + $0x6] sm:$0x1]
    %v63 = vld [vmem:[#allocation2 + $0x7] sm:$0x1]
    %v64 = vld [vmem:[#allocation2 + $0x8] sm:$0x1]
    %v65 = vld [vmem:[#allocation2 + $0x9] sm:$0x1]
    %s66 = sld [smem:[#allocation7]]
    %v67 = vstv %s66
    %s68 = sld [smem:[#allocation7 + $0x1]]
    %v69 = vstv %s68
    %s70 = sld [smem:[#allocation7 + $0x2]]
    %v71 = vstv %s70
    %s72 = sld [smem:[#allocation7 + $0x3]]
    %v73 = vstv %s72
    %s74 = sld [smem:[#allocation8]]
    %v75 = vstv %s74
    %s76 = sld [smem:[#allocation8 + $0x1]]
    %v77 = vstv %s76
    %s78 = sld [smem:[#allocation8 + $0x2]]
    %v79 = vstv %s78
    %s80 = sld [smem:[#allocation8 + $0x3]]
    %v81 = vstv %s80
    %v82 = vmul.f32 %v56, %v67
    %v83 = vmul.f32 %v57, %v69
    %v84 = vadd.f32 %v82, %v83
    %v85 = vmul.f32 %v56, %v71
    %v86 = vmul.f32 %v57, %v73
    %v87 = vadd.f32 %v85, %v86
    %v88 = vadd.f32 %v84, 0.0
    %v89 = vadd.f32 %v87, 0.0
    %vm90 = vcmp.gt.f32.partialorder %v88, 1.0
    %v91 = vsel %vm90, 1, 0
    %v92 = vcvt.s32.f32 %v91
    %vm93 = vcmp.gt.f32.partialorder %v89, 1.0
    %v94 = vsel %vm93, 1, 0
    %v95 = vcvt.s32.f32 %v94
    %v96 = vmul.f32 %v92, %v75
    %v97 = vmul.f32 %v95, %v77
    %v98 = vadd.f32 %v96, %v97
    %v99 = vmul.f32 %v92, %v79
    %v100 = vmul.f32 %v95, %v81
    %v101 = vadd.f32 %v99, %v100
    %v102 = vadd.f32 %v98, 0.0
    %v103 = vadd.f32 %v101, 0.0
    %vm104 = vcmp.gt.f32.partialorder %v102, 1.0
    %v105 = vsel %vm104, 1, 0
    %v106 = vcvt.s32.f32 %v105
    %vm107 = vcmp.gt.f32.partialorder %v103, 1.0
    %v108 = vsel %vm107, 1, 0
    %v109 = vcvt.s32.f32 %v108
    %110 = vst [vmem:[#allocation9] sm:$0x1] %v92
    %s111 = scalar_lea.vmem [#allocation9], 1
    %112 = vst [vmem:[%s111] sm:$0x1] %v95
    %s113 = scalar_lea.vmem [#allocation9], 10
    %114 = vst [vmem:[%s113] sm:$0x1] %v88
    %s115 = scalar_lea.vmem [#allocation9], 11
    %116 = vst [vmem:[%s115] sm:$0x1] %v89
    %s117 = scalar_lea.vmem [#allocation9], 20
    %118 = vst [vmem:[%s117] sm:$0x1] %v106
    %s119 = scalar_lea.vmem [#allocation9], 21
    %120 = vst [vmem:[%s119] sm:$0x1] %v109
    %s121 = scalar_lea.vmem [#allocation9], 30
    %122 = vst [vmem:[%s121] sm:$0x1] %v102
    %s123 = scalar_lea.vmem [#allocation9], 31
    %124 = vst [vmem:[%s123] sm:$0x1] %v103
    %v125 = vmul.f32 %v58, %v67
    %v126 = vmul.f32 %v59, %v69
    %v127 = vadd.f32 %v125, %v126
    %v128 = vmul.f32 %v58, %v71
    %v129 = vmul.f32 %v59, %v73
    %v130 = vadd.f32 %v128, %v129
    %v131 = vadd.f32 %v88, %v127
    %v132 = vsub.f32 %v131, %v92
    %v133 = vadd.f32 %v89, %v130
    %v134 = vsub.f32 %v133, %v95
    %vm135 = vcmp.gt.f32.partialorder %v132, 1.0
    %v136 = vsel %vm135, 1, 0
    %v137 = vcvt.s32.f32 %v136
    %vm138 = vcmp.gt.f32.partialorder %v134, 1.0
    %v139 = vsel %vm138, 1, 0
    %v140 = vcvt.s32.f32 %v139
    %v141 = vmul.f32 %v137, %v75
    %v142 = vmul.f32 %v140, %v77
    %v143 = vadd.f32 %v141, %v142
    %v144 = vmul.f32 %v137, %v79
    %v145 = vmul.f32 %v140, %v81
    %v146 = vadd.f32 %v144, %v145
    %v147 = vadd.f32 %v102, %v143
    %v148 = vsub.f32 %v147, %v106
    %v149 = vadd.f32 %v103, %v146
    %v150 = vsub.f32 %v149, %v109
    %vm151 = vcmp.gt.f32.partialorder %v148, 1.0
    %v152 = vsel %vm151, 1, 0
    %v153 = vcvt.s32.f32 %v152
    %vm154 = vcmp.gt.f32.partialorder %v150, 1.0
    %v155 = vsel %vm154, 1, 0
    %v156 = vcvt.s32.f32 %v155
    %s157 = scalar_lea.vmem [#allocation9], 2
    %158 = vst [vmem:[%s157] sm:$0x1] %v137
    %s159 = scalar_lea.vmem [#allocation9], 3
    %160 = vst [vmem:[%s159] sm:$0x1] %v140
    %s161 = scalar_lea.vmem [#allocation9], 12
    %162 = vst [vmem:[%s161] sm:$0x1] %v132
    %s163 = scalar_lea.vmem [#allocation9], 13
    %164 = vst [vmem:[%s163] sm:$0x1] %v134
    %s165 = scalar_lea.vmem [#allocation9], 22
    %166 = vst [vmem:[%s165] sm:$0x1] %v153
    %s167 = scalar_lea.vmem [#allocation9], 23
    %168 = vst [vmem:[%s167] sm:$0x1] %v156
    %s169 = scalar_lea.vmem [#allocation9], 32
    %170 = vst [vmem:[%s169] sm:$0x1] %v148
    %s171 = scalar_lea.vmem [#allocation9], 33
    %172 = vst [vmem:[%s171] sm:$0x1] %v150
    %v173 = vmul.f32 %v60, %v67
    %v174 = vmul.f32 %v61, %v69
    %v175 = vadd.f32 %v173, %v174
    %v176 = vmul.f32 %v60, %v71
    %v177 = vmul.f32 %v61, %v73
    %v178 = vadd.f32 %v176, %v177
    %v179 = vadd.f32 %v132, %v175
    %v180 = vsub.f32 %v179, %v137
    %v181 = vadd.f32 %v134, %v178
    %v182 = vsub.f32 %v181, %v140
    %vm183 = vcmp.gt.f32.partialorder %v180, 1.0
    %v184 = vsel %vm183, 1, 0
    %v185 = vcvt.s32.f32 %v184
    %vm186 = vcmp.gt.f32.partialorder %v182, 1.0
    %v187 = vsel %vm186, 1, 0
    %v188 = vcvt.s32.f32 %v187
    %v189 = vmul.f32 %v185, %v75
    %v190 = vmul.f32 %v188, %v77
    %v191 = vadd.f32 %v189, %v190
    %v192 = vmul.f32 %v185, %v79
    %v193 = vmul.f32 %v188, %v81
    %v194 = vadd.f32 %v192, %v193
    %v195 = vadd.f32 %v148, %v191
    %v196 = vsub.f32 %v195, %v153
    %v197 = vadd.f32 %v150, %v194
    %v198 = vsub.f32 %v197, %v156
    %vm199 = vcmp.gt.f32.partialorder %v196, 1.0
    %v200 = vsel %vm199, 1, 0
    %v201 = vcvt.s32.f32 %v200
    %vm202 = vcmp.gt.f32.partialorder %v198, 1.0
    %v203 = vsel %vm202, 1, 0
    %v204 = vcvt.s32.f32 %v203
    %s205 = scalar_lea.vmem [#allocation9], 4
    %206 = vst [vmem:[%s205] sm:$0x1] %v185
    %s207 = scalar_lea.vmem [#allocation9], 5
    %208 = vst [vmem:[%s207] sm:$0x1] %v188
    %s209 = scalar_lea.vmem [#allocation9], 14
    %210 = vst [vmem:[%s209] sm:$0x1] %v180
    %s211 = scalar_lea.vmem [#allocation9], 15
    %212 = vst [vmem:[%s211] sm:$0x1] %v182
    %s213 = scalar_lea.vmem [#allocation9], 24
    %214 = vst [vmem:[%s213] sm:$0x1] %v201
    %s215 = scalar_lea.vmem [#allocation9], 25
    %216 = vst [vmem:[%s215] sm:$0x1] %v204
    %s217 = scalar_lea.vmem [#allocation9], 34
    %218 = vst [vmem:[%s217] sm:$0x1] %v196
    %s219 = scalar_lea.vmem [#allocation9], 35
    %220 = vst [vmem:[%s219] sm:$0x1] %v198
    %v221 = vmul.f32 %v62, %v67
    %v222 = vmul.f32 %v63, %v69
    %v223 = vadd.f32 %v221, %v222
    %v224 = vmul.f32 %v62, %v71
    %v225 = vmul.f32 %v63, %v73
    %v226 = vadd.f32 %v224, %v225
    %v227 = vadd.f32 %v180, %v223
    %v228 = vsub.f32 %v227, %v185
    %v229 = vadd.f32 %v182, %v226
    %v230 = vsub.f32 %v229, %v188
    %vm231 = vcmp.gt.f32.partialorder %v228, 1.0
    %v232 = vsel %vm231, 1, 0
    %v233 = vcvt.s32.f32 %v232
    %vm234 = vcmp.gt.f32.partialorder %v230, 1.0
    %v235 = vsel %vm234, 1, 0
    %v236 = vcvt.s32.f32 %v235
    %v237 = vmul.f32 %v233, %v75
    %v238 = vmul.f32 %v236, %v77
    %v239 = vadd.f32 %v237, %v238
    %v240 = vmul.f32 %v233, %v79
    %v241 = vmul.f32 %v236, %v81
    %v242 = vadd.f32 %v240, %v241
    %v243 = vadd.f32 %v196, %v239
    %v244 = vsub.f32 %v243, %v201
    %v245 = vadd.f32 %v198, %v242
    %v246 = vsub.f32 %v245, %v204
    %vm247 = vcmp.gt.f32.partialorder %v244, 1.0
    %v248 = vsel %vm247, 1, 0
    %v249 = vcvt.s32.f32 %v248
    %vm250 = vcmp.gt.f32.partialorder %v246, 1.0
    %v251 = vsel %vm250, 1, 0
    %v252 = vcvt.s32.f32 %v251
    %s253 = scalar_lea.vmem [#allocation9], 6
    %254 = vst [vmem:[%s253] sm:$0x1] %v233
    %s255 = scalar_lea.vmem [#allocation9], 7
    %256 = vst [vmem:[%s255] sm:$0x1] %v236
    %s257 = scalar_lea.vmem [#allocation9], 16
    %258 = vst [vmem:[%s257] sm:$0x1] %v228
    %s259 = scalar_lea.vmem [#allocation9], 17
    %260 = vst [vmem:[%s259] sm:$0x1] %v230
    %s261 = scalar_lea.vmem [#allocation9], 26
    %262 = vst [vmem:[%s261] sm:$0x1] %v249
    %s263 = scalar_lea.vmem [#allocation9], 27
    %264 = vst [vmem:[%s263] sm:$0x1] %v252
    %s265 = scalar_lea.vmem [#allocation9], 36
    %266 = vst [vmem:[%s265] sm:$0x1] %v244
    %s267 = scalar_lea.vmem [#allocation9], 37
    %268 = vst [vmem:[%s267] sm:$0x1] %v246
    %v269 = vmul.f32 %v64, %v67
    %v270 = vmul.f32 %v65, %v69
    %v271 = vadd.f32 %v269, %v270
    %v272 = vmul.f32 %v64, %v71
    %v273 = vmul.f32 %v65, %v73
    %v274 = vadd.f32 %v272, %v273
    %v275 = vadd.f32 %v228, %v271
    %v276 = vsub.f32 %v275, %v233
    %v277 = vadd.f32 %v230, %v274
    %v278 = vsub.f32 %v277, %v236
    %vm279 = vcmp.gt.f32.partialorder %v276, 1.0
    %v280 = vsel %vm279, 1, 0
    %v281 = vcvt.s32.f32 %v280
    %vm282 = vcmp.gt.f32.partialorder %v278, 1.0
    %v283 = vsel %vm282, 1, 0
    %v284 = vcvt.s32.f32 %v283
    %v285 = vmul.f32 %v281, %v75
    %v286 = vmul.f32 %v284, %v77
    %v287 = vadd.f32 %v285, %v286
    %v288 = vmul.f32 %v281, %v79
    %v289 = vmul.f32 %v284, %v81
    %v290 = vadd.f32 %v288, %v289
    %v291 = vadd.f32 %v244, %v287
    %v292 = vsub.f32 %v291, %v249
    %v293 = vadd.f32 %v246, %v290
    %v294 = vsub.f32 %v293, %v252
    %vm295 = vcmp.gt.f32.partialorder %v292, 1.0
    %v296 = vsel %vm295, 1, 0
    %v297 = vcvt.s32.f32 %v296
    %vm298 = vcmp.gt.f32.partialorder %v294, 1.0
    %v299 = vsel %vm298, 1, 0
    %v300 = vcvt.s32.f32 %v299
    %s301 = scalar_lea.vmem [#allocation9], 8
    %302 = vst [vmem:[%s301] sm:$0x1] %v281
    %s303 = scalar_lea.vmem [#allocation9], 9
    %304 = vst [vmem:[%s303] sm:$0x1] %v284
    %s305 = scalar_lea.vmem [#allocation9], 18
    %306 = vst [vmem:[%s305] sm:$0x1] %v276
    %s307 = scalar_lea.vmem [#allocation9], 19
    %308 = vst [vmem:[%s307] sm:$0x1] %v278
    %s309 = scalar_lea.vmem [#allocation9], 28
    %310 = vst [vmem:[%s309] sm:$0x1] %v297
    %s311 = scalar_lea.vmem [#allocation9], 29
    %312 = vst [vmem:[%s311] sm:$0x1] %v300
    %s313 = scalar_lea.vmem [#allocation9], 38
    %314 = vst [vmem:[%s313] sm:$0x1] %v292
    %s315 = scalar_lea.vmem [#allocation9], 39
    %316 = vst [vmem:[%s315] sm:$0x1] %v294
    // Predicated region
    $region26: #{tpu_custom_call.1} parent=1 // pred_check
      _
    $region27: #{tpu_custom_call.1} parent=1 // pred_check_branch
      %318 = sbr.rel (0) target = $region29
    $region28: #{tpu_custom_call.1} parent=1 // pred_region
      %320 = vsyncadd [#allocation4], 0
      %s321 = sshll.u32 [#allocation9], 4
      %s322 = int_to_ptr.vmem [resolvable:$true] %s321
      %s323 = sshll.u32 %s3, 4
      %s324 = int_to_ptr.hbm [resolvable:$true] %s323
      %329 = dma.vmem_to_hbm [thread:$0]  %s322, 640, %s324, [#allocation4], 16, 16, 1
    $region29: #{tpu_custom_call.1} parent=1 // pred_fallthru
      _
    // Predicated region
    $region30: #{tpu_custom_call.1} parent=1 // pred_check
      _
    $region31: #{tpu_custom_call.1} parent=1 // pred_check_branch
      %331 = sbr.rel (0) target = $region33
    $region32: #{tpu_custom_call.1} parent=1 // pred_region
      %333 = dma.done [#allocation4], 640
    $region33: #{tpu_custom_call.1} parent=1 // pred_fallthru
      _
    %334 = vsyncpa [#allocation3], 1
    %335 = vsyncpa [#allocation4], 1
    %336 = vsyncpa [#allocation5], 1
    %337 = vsyncpa [#allocation6], 1

</llo_original>
